<compile_context>
chip_gen: v7x
topology: tpu7x:2x2x1
jax: 0.10.0
libtpu: 0.0.40
codegen_flags: <defaults>
</compile_context>

<pallas_src>
import jax
import jax.numpy as jnp
from jax import lax
from jax.experimental import pallas as pl
from jax.experimental.pallas import tpu as pltpu


def _make_mlp_kernel(num_layers):
    """Kernel over one batch tile.

    x_ref: (TB, I)  — batch on sublanes, input features on lanes.
    All hidden activations: (features, TB) — batch on lanes (lane-dense).
    o_ref: (1, TB)  — lane-dense output slab.
    """

    def kernel(*refs):
        x_ref = refs[0]
        o_ref = refs[-1]
        params = refs[1:-1]           # [W0, b0, W1, b1, ...]

        x_blk = x_ref[...]            # (TB, I)

        # Layer 0: W0 @ x^T without materializing x^T (trans-B contraction).
        w0 = params[0][...]           # (H, I)
        b0 = params[1][...]           # (H, 1) -> broadcasts over lanes
        z = lax.dot_general(
            w0, x_blk, (((1,), (1,)), ((), ())),
            preferred_element_type=jnp.float32) + b0            # (H, TB)
        h = jnp.maximum(z, 0.0)

        # Remaining layers: plain W @ h on the MXU.
        for l in range(1, num_layers):
            w = params[2 * l][...]        # (H_out, H_in)
            b = params[2 * l + 1][...]    # (H_out, 1)
            z = jnp.dot(w, h, preferred_element_type=jnp.float32) + b
            if l < num_layers - 1:
                h = jnp.maximum(z, 0.0)   # ReLU
            else:
                h = jax.nn.sigmoid(z)     # final Sigmoid, (1, TB)

        o_ref[...] = h

    return kernel


def simple_dense_net(x, weights, biases, *, block_b=512):
    """x: (B, num_inputs); weights[l]: (out_l, in_l); biases[l]: (out_l,).

    Returns (B, 1) f32, matching SimpleDenseNet.forward.
    """
    B, num_inputs = x.shape
    num_layers = len(weights)
    assert len(biases) == num_layers and weights[-1].shape[0] == 1

    # Batch tile: multiple of 128, at most `block_b`, no bigger than needed.
    block_b = max(128, (block_b // 128) * 128)
    bb = min(block_b, pl.cdiv(B, 128) * 128)
    pad_b = pl.cdiv(B, bb) * bb

    x_p = x.astype(jnp.float32)
    if pad_b != B:
        x_p = jnp.pad(x_p, ((0, pad_b - B), (0, 0)))             # (pad_b, I)

    params = []
    in_specs = [pl.BlockSpec((bb, num_inputs), lambda i: (i, 0))]
    for w, b in zip(weights, biases):
        w = w.astype(jnp.float32)                                # (H_out, H_in)
        b2 = b.astype(jnp.float32).reshape(-1, 1)                # (H_out, 1)
        params += [w, b2]
        in_specs += [
            pl.BlockSpec(w.shape, lambda i: (0, 0)),   # resident across tiles
            pl.BlockSpec(b2.shape, lambda i: (0, 0)),
        ]

    out = pl.pallas_call(
        _make_mlp_kernel(num_layers),
        out_shape=jax.ShapeDtypeStruct((1, pad_b), jnp.float32),
        grid=(pad_b // bb,),
        in_specs=in_specs,
        out_specs=pl.BlockSpec((1, bb), lambda i: (0, i)),
        compiler_params=pltpu.CompilerParams(
            dimension_semantics=("parallel",)),
    )(x_p, *params)

    return out[0, :B].reshape(B, 1)


def _reference(x, weights, biases):
    h = x
    for l, (w, b) in enumerate(zip(weights, biases)):
        z = h @ w.T + b[None, :]
        h = jax.nn.relu(z) if l < len(weights) - 1 else jax.nn.sigmoid(z)
    return h


if __name__ == "__main__":
    num_inputs = 32
    num_hidden_layers = 3
    num_neurons = 32
    batch = 8

    key = jax.random.PRNGKey(0)
    keys = jax.random.split(key, 2 * (num_hidden_layers + 1) + 1)

    x = jax.random.normal(keys[0], (batch, num_inputs), dtype=jnp.float32)

    # Layer dims exactly as SimpleDenseNet builds them.
    dims = [num_inputs] + [num_neurons] * num_hidden_layers + [1]
    weights, biases = [], []
    ki = 1
    for fin, fout in zip(dims[:-1], dims[1:]):
        bound = 1.0 / jnp.sqrt(jnp.float32(fin))   # nn.Linear default init
        weights.append(
            jax.random.uniform(keys[ki], (fout, fin), jnp.float32, -bound, bound))
        ki += 1
        biases.append(
            jax.random.uniform(keys[ki], (fout,), jnp.float32, -bound, bound))
        ki += 1

    out = simple_dense_net(x, weights, biases)
    out = jax.block_until_ready(out)

    ref = _reference(x, weights, biases)
    assert out.shape == (batch, 1), out.shape
    assert jnp.allclose(out, ref, atol=1e-5, rtol=1e-5), (out, ref)

    print("KERNEL_OK")
</pallas_src>

<mosaic_0001>
module attributes {stable_mosaic.version = 11 : i64} {
  func.func @kernel(%arg0: i32, %arg1: memref<128x32xf32, #tpu.memory_space<vmem>>, %arg2: memref<32x32xf32, #tpu.memory_space<vmem>>, %arg3: memref<32x1xf32, #tpu.memory_space<vmem>>, %arg4: memref<32x32xf32, #tpu.memory_space<vmem>>, %arg5: memref<32x1xf32, #tpu.memory_space<vmem>>, %arg6: memref<32x32xf32, #tpu.memory_space<vmem>>, %arg7: memref<32x1xf32, #tpu.memory_space<vmem>>, %arg8: memref<1x32xf32, #tpu.memory_space<vmem>>, %arg9: memref<1x1xf32, #tpu.memory_space<vmem>>, %arg10: memref<1x128xf32, #tpu.memory_space<vmem>>) attributes {dimension_semantics = [#tpu.dimension_semantics<parallel>], iteration_bounds = array<i64: 1>, scalar_prefetch = 0 : i64, scratch_operands = 0 : i64, tpu.core_type = #tpu.core_type<tc>, window_params = [{transform_indices = @transform_0, window_bounds = array<i64: 128, 32>}, {pipeline_mode = #tpu.pipeline_mode<synchronous>, transform_indices = @transform_1, window_bounds = array<i64: 32, 32>}, {pipeline_mode = #tpu.pipeline_mode<synchronous>, transform_indices = @transform_2, window_bounds = array<i64: 32, 1>}, {pipeline_mode = #tpu.pipeline_mode<synchronous>, transform_indices = @transform_3, window_bounds = array<i64: 32, 32>}, {pipeline_mode = #tpu.pipeline_mode<synchronous>, transform_indices = @transform_4, window_bounds = array<i64: 32, 1>}, {pipeline_mode = #tpu.pipeline_mode<synchronous>, transform_indices = @transform_5, window_bounds = array<i64: 32, 32>}, {pipeline_mode = #tpu.pipeline_mode<synchronous>, transform_indices = @transform_6, window_bounds = array<i64: 32, 1>}, {pipeline_mode = #tpu.pipeline_mode<synchronous>, transform_indices = @transform_7, window_bounds = array<i64: 1, 32>}, {pipeline_mode = #tpu.pipeline_mode<synchronous>, transform_indices = @transform_8, window_bounds = array<i64: 1, 1>}, {transform_indices = @transform_9, window_bounds = array<i64: 1, 128>}]} {
    %c0 = arith.constant 0 : index
    %c0_0 = arith.constant 0 : index
    %0 = vector.load %arg1[%c0, %c0_0] : memref<128x32xf32, #tpu.memory_space<vmem>>, vector<128x32xf32>
    %c0_1 = arith.constant 0 : index
    %c0_2 = arith.constant 0 : index
    %1 = vector.load %arg2[%c0_1, %c0_2] : memref<32x32xf32, #tpu.memory_space<vmem>>, vector<32x32xf32>
    %c0_3 = arith.constant 0 : index
    %c0_4 = arith.constant 0 : index
    %2 = vector.load %arg3[%c0_3, %c0_4] : memref<32x1xf32, #tpu.memory_space<vmem>>, vector<32x1xf32>
    %cst = arith.constant dense<0.000000e+00> : vector<32x128xf32>
    %3 = tpu.matmul %1, %0, %cst {dimension_numbers = #tpu.dot_dimension_numbers<[1], [1], [0], [0], [0, 0, 1, 0], [], []>} : vector<32x32xf32>, vector<128x32xf32>, vector<32x128xf32> -> vector<32x128xf32>
    %4 = vector.broadcast %2 : vector<32x1xf32> to vector<32x128xf32>
    %5 = arith.addf %3, %4 : vector<32x128xf32>
    %cst_5 = arith.constant 0.000000e+00 : f32
    %6 = vector.broadcast %cst_5 : f32 to vector<32x128xf32>
    %7 = arith.maximumf %5, %6 : vector<32x128xf32>
    %c0_6 = arith.constant 0 : index
    %c0_7 = arith.constant 0 : index
    %8 = vector.load %arg4[%c0_6, %c0_7] : memref<32x32xf32, #tpu.memory_space<vmem>>, vector<32x32xf32>
    %c0_8 = arith.constant 0 : index
    %c0_9 = arith.constant 0 : index
    %9 = vector.load %arg5[%c0_8, %c0_9] : memref<32x1xf32, #tpu.memory_space<vmem>>, vector<32x1xf32>
    %cst_10 = arith.constant dense<0.000000e+00> : vector<32x128xf32>
    %10 = tpu.matmul %8, %7, %cst_10 {dimension_numbers = #tpu.dot_dimension_numbers<[1], [0], [0], [1], [0, 0, 1, 1], [], []>} : vector<32x32xf32>, vector<32x128xf32>, vector<32x128xf32> -> vector<32x128xf32>
    %11 = vector.broadcast %9 : vector<32x1xf32> to vector<32x128xf32>
    %12 = arith.addf %10, %11 : vector<32x128xf32>
    %cst_11 = arith.constant 0.000000e+00 : f32
    %13 = vector.broadcast %cst_11 : f32 to vector<32x128xf32>
    %14 = arith.maximumf %12, %13 : vector<32x128xf32>
    %c0_12 = arith.constant 0 : index
    %c0_13 = arith.constant 0 : index
    %15 = vector.load %arg6[%c0_12, %c0_13] : memref<32x32xf32, #tpu.memory_space<vmem>>, vector<32x32xf32>
    %c0_14 = arith.constant 0 : index
    %c0_15 = arith.constant 0 : index
    %16 = vector.load %arg7[%c0_14, %c0_15] : memref<32x1xf32, #tpu.memory_space<vmem>>, vector<32x1xf32>
    %cst_16 = arith.constant dense<0.000000e+00> : vector<32x128xf32>
    %17 = tpu.matmul %15, %14, %cst_16 {dimension_numbers = #tpu.dot_dimension_numbers<[1], [0], [0], [1], [0, 0, 1, 1], [], []>} : vector<32x32xf32>, vector<32x128xf32>, vector<32x128xf32> -> vector<32x128xf32>
    %18 = vector.broadcast %16 : vector<32x1xf32> to vector<32x128xf32>
    %19 = arith.addf %17, %18 : vector<32x128xf32>
    %cst_17 = arith.constant 0.000000e+00 : f32
    %20 = vector.broadcast %cst_17 : f32 to vector<32x128xf32>
    %21 = arith.maximumf %19, %20 : vector<32x128xf32>
    %c0_18 = arith.constant 0 : index
    %c0_19 = arith.constant 0 : index
    %22 = vector.load %arg8[%c0_18, %c0_19] : memref<1x32xf32, #tpu.memory_space<vmem>>, vector<1x32xf32>
    %c0_20 = arith.constant 0 : index
    %c0_21 = arith.constant 0 : index
    %23 = vector.load %arg9[%c0_20, %c0_21] : memref<1x1xf32, #tpu.memory_space<vmem>>, vector<1x1xf32>
    %cst_22 = arith.constant dense<0.000000e+00> : vector<1x128xf32>
    %24 = tpu.matmul %22, %21, %cst_22 {dimension_numbers = #tpu.dot_dimension_numbers<[1], [0], [0], [1], [0, 0, 1, 1], [], []>} : vector<1x32xf32>, vector<32x128xf32>, vector<1x128xf32> -> vector<1x128xf32>
    %25 = vector.broadcast %23 : vector<1x1xf32> to vector<1x128xf32>
    %26 = arith.addf %24, %25 : vector<1x128xf32>
    %27 = arith.negf %26 : vector<1x128xf32>
    %28 = math.exp %27 : vector<1x128xf32>
    %cst_23 = arith.constant 1.000000e+00 : f32
    %29 = vector.broadcast %cst_23 : f32 to vector<1x128xf32>
    %30 = arith.addf %29, %28 : vector<1x128xf32>
    %31 = arith.divf %29, %30 : vector<1x128xf32>
    %c0_24 = arith.constant 0 : index
    %c0_25 = arith.constant 0 : index
    %32 = vector.load %arg10[%c0_24, %c0_25] : memref<1x128xf32, #tpu.memory_space<vmem>>, vector<1x128xf32>
    tpu.vector_store %arg10[%c0_24, %c0_25], %31 {strides = array<i32>} : memref<1x128xf32, #tpu.memory_space<vmem>>, vector<1x128xf32>,
    return
  }
  func.func @transform_0(%arg0: i32) -> (i32, i32) {
    %c0_i32 = arith.constant 0 : i32
    %c0_i32_0 = arith.constant 0 : i32
    return %arg0, %c0_i32 : i32, i32
  }
  func.func @transform_1(%arg0: i32) -> (i32, i32) {
    %c0_i32 = arith.constant 0 : i32
    %c0_i32_0 = arith.constant 0 : i32
    %c0_i32_1 = arith.constant 0 : i32
    return %c0_i32, %c0_i32_0 : i32, i32
  }
  func.func @transform_2(%arg0: i32) -> (i32, i32) {
    %c0_i32 = arith.constant 0 : i32
    %c0_i32_0 = arith.constant 0 : i32
    %c0_i32_1 = arith.constant 0 : i32
    return %c0_i32, %c0_i32_0 : i32, i32
  }
  func.func @transform_3(%arg0: i32) -> (i32, i32) {
    %c0_i32 = arith.constant 0 : i32
    %c0_i32_0 = arith.constant 0 : i32
    %c0_i32_1 = arith.constant 0 : i32
    return %c0_i32, %c0_i32_0 : i32, i32
  }
  func.func @transform_4(%arg0: i32) -> (i32, i32) {
    %c0_i32 = arith.constant 0 : i32
    %c0_i32_0 = arith.constant 0 : i32
    %c0_i32_1 = arith.constant 0 : i32
    return %c0_i32, %c0_i32_0 : i32, i32
  }
  func.func @transform_5(%arg0: i32) -> (i32, i32) {
    %c0_i32 = arith.constant 0 : i32
    %c0_i32_0 = arith.constant 0 : i32
    %c0_i32_1 = arith.constant 0 : i32
    return %c0_i32, %c0_i32_0 : i32, i32
  }
  func.func @transform_6(%arg0: i32) -> (i32, i32) {
    %c0_i32 = arith.constant 0 : i32
    %c0_i32_0 = arith.constant 0 : i32
    %c0_i32_1 = arith.constant 0 : i32
    return %c0_i32, %c0_i32_0 : i32, i32
  }
  func.func @transform_7(%arg0: i32) -> (i32, i32) {
    %c0_i32 = arith.constant 0 : i32
    %c0_i32_0 = arith.constant 0 : i32
    %c0_i32_1 = arith.constant 0 : i32
    return %c0_i32, %c0_i32_0 : i32, i32
  }
  func.func @transform_8(%arg0: i32) -> (i32, i32) {
    %c0_i32 = arith.constant 0 : i32
    %c0_i32_0 = arith.constant 0 : i32
    %c0_i32_1 = arith.constant 0 : i32
    return %c0_i32, %c0_i32_0 : i32, i32
  }
  func.func @transform_9(%arg0: i32) -> (i32, i32) {
    %c0_i32 = arith.constant 0 : i32
    %c0_i32_0 = arith.constant 0 : i32
    return %c0_i32, %arg0 : i32, i32
  }
}

</mosaic_0001>

<llo_original>
// kernel: tpu_custom_call.1
$region0: #{tpu_custom_call.1}
  #allocation0 [shape = 'u32[]', space=smem, size = 0x4, offset = 0x4, fixed_abs, tag = 'smem constant byte address 0x4 - core index']
  #allocation1 [shape = 'u32[144,128]{1,0:T(1,128)}', space=vmem, size = 0x12000, scoped, tag = 'internal scratch']
  #allocation2 [shape = 'f32[1,1]{1,0:T(1,128)S(1)}', space=vmem, size = 0x200, scoped, tag = 'scoped memory for tpu_custom_call.1']
  %s0 = inlined_call_operand.vmem [shape: f32[128,32], index: 0, kind: input, shape index: {}]
  %s1 = inlined_call_operand.vmem [shape: f32[32,32], index: 1, kind: input, shape index: {}]
  %s2 = inlined_call_operand.vmem [shape: f32[32,1], index: 2, kind: input, shape index: {}]
  %s3 = inlined_call_operand.vmem [shape: f32[32,32], index: 3, kind: input, shape index: {}]
  %s4 = inlined_call_operand.vmem [shape: f32[32,1], index: 4, kind: input, shape index: {}]
  %s5 = inlined_call_operand.vmem [shape: f32[32,32], index: 5, kind: input, shape index: {}]
  %s6 = inlined_call_operand.vmem [shape: f32[32,1], index: 6, kind: input, shape index: {}]
  %s7 = inlined_call_operand.vmem [shape: f32[1,32], index: 7, kind: input, shape index: {}]
  %s8 = inlined_call_operand.<no memory space> [shape: f32[1,1], index: 8, kind: input, shape index: {}]
  %s9 = inlined_call_operand.hbm [shape: f32[1,128], index: 9, kind: output, shape index: {}]
  %s10 = sld [smem:[#allocation0]]
  $region46: #{tpu_custom_call.1} parent=0
    _
  %s12 = ssub.s32 1, %s10
  %s13 = scalar_select 0, %s12, %s10
  %v14 = vstv %s8
  %15 = vst [vmem:[#allocation2] sm:$0x1] %v14
  $region1: #{tpu_custom_call.1} parent=0
    #allocation3 [shape = 'u8[512]{0}', space=vmem, size = 0x400, scoped, tag = 'output window, operand 0, single buffered']
    #allocation4 [shape = 's32[1]{0}', space=sflag, size = 0x4, scoped, tag = 'scoped memory for tpu_custom_call.1']
    %16 = vsyncpa [#allocation4], 0
    // Predicated region
    $region2: #{tpu_custom_call.1} parent=1 // pred_check
      _
    $region3: #{tpu_custom_call.1} parent=1 // pred_check_branch
      %18 = sbr.rel (0) target = $region5
    $region4: #{tpu_custom_call.1} parent=1 // pred_region
      _
    $region5: #{tpu_custom_call.1} parent=1 // pred_fallthru
      _
    // Predicated region
    $region6: #{tpu_custom_call.1} parent=1 // pred_check
      _
    $region7: #{tpu_custom_call.1} parent=1 // pred_check_branch
      %20 = sbr.rel (0) target = $region9
    $region8: #{tpu_custom_call.1} parent=1 // pred_region
      _
    $region9: #{tpu_custom_call.1} parent=1 // pred_fallthru
      _
    // Predicated region
    $region10: #{tpu_custom_call.1} parent=1 // pred_check
      _
    $region11: #{tpu_custom_call.1} parent=1 // pred_check_branch
      %22 = sbr.rel (0) target = $region13
    $region12: #{tpu_custom_call.1} parent=1 // pred_region
      _
    $region13: #{tpu_custom_call.1} parent=1 // pred_fallthru
      _
    // Predicated region
    $region14: #{tpu_custom_call.1} parent=1 // pred_check
      _
    $region15: #{tpu_custom_call.1} parent=1 // pred_check_branch
      %24 = sbr.rel (0) target = $region17
    $region16: #{tpu_custom_call.1} parent=1 // pred_region
      _
    $region17: #{tpu_custom_call.1} parent=1 // pred_fallthru
      _
    // Predicated region
    $region18: #{tpu_custom_call.1} parent=1 // pred_check
      _
    $region19: #{tpu_custom_call.1} parent=1 // pred_check_branch
      %26 = sbr.rel (0) target = $region21
    $region20: #{tpu_custom_call.1} parent=1 // pred_region
      _
    $region21: #{tpu_custom_call.1} parent=1 // pred_fallthru
      _
    // Predicated region
    $region22: #{tpu_custom_call.1} parent=1 // pred_check
      _
    $region23: #{tpu_custom_call.1} parent=1 // pred_check_branch
      %28 = sbr.rel (0) target = $region25
    $region24: #{tpu_custom_call.1} parent=1 // pred_region
      _
    $region25: #{tpu_custom_call.1} parent=1 // pred_fallthru
      _
    // Predicated region
    $region26: #{tpu_custom_call.1} parent=1 // pred_check
      _
    $region27: #{tpu_custom_call.1} parent=1 // pred_check_branch
      %30 = sbr.rel (0) target = $region29
    $region28: #{tpu_custom_call.1} parent=1 // pred_region
      _
    $region29: #{tpu_custom_call.1} parent=1 // pred_fallthru
      _
    // Predicated region
    $region30: #{tpu_custom_call.1} parent=1 // pred_check
      _
    $region31: #{tpu_custom_call.1} parent=1 // pred_check_branch
      %32 = sbr.rel (0) target = $region33
    $region32: #{tpu_custom_call.1} parent=1 // pred_region
      _
    $region33: #{tpu_custom_call.1} parent=1 // pred_fallthru
      _
    // Predicated region
    $region34: #{tpu_custom_call.1} parent=1 // pred_check
      _
    $region35: #{tpu_custom_call.1} parent=1 // pred_check_branch
      %34 = sbr.rel (0) target = $region37
    $region36: #{tpu_custom_call.1} parent=1 // pred_region
      _
    $region37: #{tpu_custom_call.1} parent=1 // pred_fallthru
      _
    %v35 = vld [vmem:[%s0] sm:$0xff]
    %v36 = vld [vmem:[%s0 + $0x8] sm:$0xff]
    %v37 = vld [vmem:[%s0 + $0x10] sm:$0xff]
    %v38 = vld [vmem:[%s0 + $0x18] sm:$0xff]
    %v39 = vld [vmem:[%s0 + $0x20] sm:$0xff]
    %v40 = vld [vmem:[%s0 + $0x28] sm:$0xff]
    %v41 = vld [vmem:[%s0 + $0x30] sm:$0xff]
    %v42 = vld [vmem:[%s0 + $0x38] sm:$0xff]
    %v43 = vld [vmem:[%s0 + $0x40] sm:$0xff]
    %v44 = vld [vmem:[%s0 + $0x48] sm:$0xff]
    %v45 = vld [vmem:[%s0 + $0x50] sm:$0xff]
    %v46 = vld [vmem:[%s0 + $0x58] sm:$0xff]
    %v47 = vld [vmem:[%s0 + $0x60] sm:$0xff]
    %v48 = vld [vmem:[%s0 + $0x68] sm:$0xff]
    %v49 = vld [vmem:[%s0 + $0x70] sm:$0xff]
    %v50 = vld [vmem:[%s0 + $0x78] sm:$0xff]
    %v51 = vld [vmem:[%s1] sm:$0xff]
    %v52 = vld [vmem:[%s1 + $0x8] sm:$0xff]
    %v53 = vld [vmem:[%s1 + $0x10] sm:$0xff]
    %v54 = vld [vmem:[%s1 + $0x18] sm:$0xff]
    %v55 = vld [vmem:[%s2] sm:$0xff]
    %v56 = vld [vmem:[%s2 + $0x8] sm:$0xff]
    %v57 = vld [vmem:[%s2 + $0x10] sm:$0xff]
    %v58 = vld [vmem:[%s2 + $0x18] sm:$0xff]
    %60 = vset.pattern.permute.xlu0 0
    %61 = vperm.xlu0 %60, %v55
    %v62 = vpop.permute.xlu0 %61
    %65 = vset.pattern.permute.xlu0 0
    %66 = vperm.xlu0 %65, %v56
    %v67 = vpop.permute.xlu0 %66
    %70 = vset.pattern.permute.xlu0 0
    %71 = vperm.xlu0 %70, %v57
    %v72 = vpop.permute.xlu0 %71
    %75 = vset.pattern.permute.xlu0 0
    %76 = vperm.xlu0 %75, %v58
    %v77 = vpop.permute.xlu0 %76
    %vm79 = vcmask 261120
    %v81 = vsel %vm79, %v51, 0
    %v84 = vsel %vm79, %v52, 0
    %v87 = vsel %vm79, %v53, 0
    %v90 = vsel %vm79, %v54, 0
    %v93 = vsel %vm79, %v35, 0
    %v96 = vsel %vm79, %v36, 0
    %v99 = vsel %vm79, %v37, 0
    %v102 = vsel %vm79, %v38, 0
    %v105 = vsel %vm79, %v39, 0
    %v108 = vsel %vm79, %v40, 0
    %v111 = vsel %vm79, %v41, 0
    %v114 = vsel %vm79, %v42, 0
    %v117 = vsel %vm79, %v43, 0
    %v120 = vsel %vm79, %v44, 0
    %v123 = vsel %vm79, %v45, 0
    %v126 = vsel %vm79, %v46, 0
    %v129 = vsel %vm79, %v47, 0
    %v132 = vsel %vm79, %v48, 0
    %v135 = vsel %vm79, %v49, 0
    %v138 = vsel %vm79, %v50, 0
    %140 = vmatprep.subr.mxu0 0.0
    %141 = vmatpush1.xpose.msra.mxu0 %v93
    %142 = vmatprep.subr.mxu0 0.0
    %143 = vmatpush1.xpose.msra.mxu0 %v96
    %144 = vmatprep.subr.mxu0 0.0
    %145 = vmatpush1.xpose.msra.mxu0 %v99
    %146 = vmatprep.subr.mxu0 0.0
    %147 = vmatpush1.xpose.msra.mxu0 %v102
    %148 = vmatprep.subr.mxu0 0.0
    %149 = vmatpush1.xpose.msra.mxu0 %v105
    %150 = vmatprep.subr.mxu0 0.0
    %151 = vmatpush1.xpose.msra.mxu0 %v108
    %152 = vmatprep.subr.mxu0 0.0
    %153 = vmatpush1.xpose.msra.mxu0 %v111
    %154 = vmatprep.subr.mxu0 0.0
    %155 = vmatpush1.xpose.msra.mxu0 %v114
    %156 = vmatprep.subr.mxu0 0.0
    %157 = vmatpush1.xpose.msra.mxu0 %v117
    %158 = vmatprep.subr.mxu0 0.0
    %159 = vmatpush1.xpose.msra.mxu0 %v120
    %160 = vmatprep.subr.mxu0 0.0
    %161 = vmatpush1.xpose.msra.mxu0 %v123
    %162 = vmatprep.subr.mxu0 0.0
    %163 = vmatpush1.xpose.msra.mxu0 %v126
    %164 = vmatprep.subr.mxu0 0.0
    %165 = vmatpush1.xpose.msra.mxu0 %v129
    %166 = vmatprep.subr.mxu0 0.0
    %167 = vmatpush1.xpose.msra.mxu0 %v132
    %168 = vmatprep.subr.mxu0 0.0
    %169 = vmatpush1.xpose.msra.mxu0 %v135
    %170 = vmatprep.subr.mxu0 0.0
    %171 = vmatpush1.xpose.msra.mxu0 %v138
    %172 = vmatprep.subr.mxu0 0.0
    %173 = vmatpush1.xpose.msra.mxu0 0.0
    %174 = vmatprep.subr.mxu0 0.0
    %175 = vmatpush1.xpose.msra.mxu0 0.0
    %176 = vmatprep.subr.mxu0 0.0
    %177 = vmatpush1.xpose.msra.mxu0 0.0
    %178 = vmatprep.subr.mxu0 0.0
    %179 = vmatpush1.xpose.msra.mxu0 0.0
    %180 = vmatprep.subr.mxu0 0.0
    %181 = vmatpush1.xpose.msra.mxu0 0.0
    %182 = vmatprep.subr.mxu0 0.0
    %183 = vmatpush1.xpose.msra.mxu0 0.0
    %184 = vmatprep.subr.mxu0 0.0
    %185 = vmatpush1.xpose.msra.mxu0 0.0
    %186 = vmatprep.subr.mxu0 0.0
    %187 = vmatpush1.xpose.msra.mxu0 0.0
    %188 = vmatprep.subr.mxu0 0.0
    %189 = vmatpush1.xpose.msra.mxu0 0.0
    %190 = vmatprep.subr.mxu0 0.0
    %191 = vmatpush1.xpose.msra.mxu0 0.0
    %192 = vmatprep.subr.mxu0 0.0
    %193 = vmatpush1.xpose.msra.mxu0 0.0
    %194 = vmatprep.subr.mxu0 0.0
    %195 = vmatpush1.xpose.msra.mxu0 0.0
    %196 = vmatprep.subr.mxu0 0.0
    %197 = vmatpush1.xpose.msra.mxu0 0.0
    %198 = vmatprep.subr.mxu0 0.0
    %199 = vmatpush1.xpose.msra.mxu0 0.0
    %200 = vmatprep.subr.mxu0 0.0
    %201 = vmatpush1.xpose.msra.mxu0 0.0
    %202 = vmatprep.subr.mxu0 0.0
    %203 = vmatpush1.xpose.msra.mxu0 0.0
    %204 = vmatprep.mubr.f32.mxu0 0.0
    %205 = vmatmul.mubr.f32.gmra.mrb[0].mxu0 %v81
    %v206 = vpop.f32.mrb[0].mxu0
    %v207 = vadd.f32 %v62, %v206
    %v208 = vpop.f32.mrb[0].mxu0
    %209 = vmatprep.mubr.f32.mxu0 0.0
    %210 = vmatmul.mubr.f32.gmra.mrb[0].mxu0 %v84
    %v211 = vpop.f32.mrb[0].mxu0
    %v212 = vadd.f32 %v67, %v211
    %v213 = vpop.f32.mrb[0].mxu0
    %214 = vmatprep.mubr.f32.mxu0 0.0
    %215 = vmatmul.mubr.f32.gmra.mrb[0].mxu0 %v87
    %v216 = vpop.f32.mrb[0].mxu0
    %v217 = vadd.f32 %v72, %v216
    %v218 = vpop.f32.mrb[0].mxu0
    %219 = vmatprep.mubr.f32.mxu0 0.0
    %220 = vmatmul.mubr.f32.gmra.mrb[0].mxu0 %v90
    %v221 = vpop.f32.mrb[0].mxu0
    %v222 = vadd.f32 %v77, %v221
    %v223 = vpop.f32.mrb[0].mxu0
    %224 = vdwg.mxu0
    %v225 = vmax.f32 %v207, 0.0
    %v226 = vmax.f32 %v212, 0.0
    %v227 = vmax.f32 %v217, 0.0
    %v228 = vmax.f32 %v222, 0.0
    %v229 = vld [vmem:[%s3] sm:$0xff]
    %v230 = vld [vmem:[%s3 + $0x8] sm:$0xff]
    %v231 = vld [vmem:[%s3 + $0x10] sm:$0xff]
    %v232 = vld [vmem:[%s3 + $0x18] sm:$0xff]
    %v233 = vld [vmem:[%s4] sm:$0xff]
    %v234 = vld [vmem:[%s4 + $0x8] sm:$0xff]
    %v235 = vld [vmem:[%s4 + $0x10] sm:$0xff]
    %v236 = vld [vmem:[%s4 + $0x18] sm:$0xff]
    %238 = vset.pattern.permute.xlu0 0
    %239 = vperm.xlu0 %238, %v233
    %v240 = vpop.permute.xlu0 %239
    %243 = vset.pattern.permute.xlu0 0
    %244 = vperm.xlu0 %243, %v234
    %v245 = vpop.permute.xlu0 %244
    %248 = vset.pattern.permute.xlu0 0
    %249 = vperm.xlu0 %248, %v235
    %v250 = vpop.permute.xlu0 %249
    %253 = vset.pattern.permute.xlu0 0
    %254 = vperm.xlu0 %253, %v236
    %v255 = vpop.permute.xlu0 %254
    %v258 = vsel %vm79, %v229, 0
    %v261 = vsel %vm79, %v230, 0
    %v264 = vsel %vm79, %v231, 0
    %v267 = vsel %vm79, %v232, 0
    %269 = vmatprep.subr.mxu0 0.0
    %270 = vmatpush1.msra.mxu0 %v225
    %271 = vmatprep.subr.mxu0 0.0
    %272 = vmatpush1.msra.mxu0 %v226
    %273 = vmatprep.subr.mxu0 0.0
    %274 = vmatpush1.msra.mxu0 %v227
    %275 = vmatprep.subr.mxu0 0.0
    %276 = vmatpush1.msra.mxu0 %v228
    %277 = vmatprep.subr.mxu0 0.0
    %278 = vmatpush1.msra.mxu0 0.0
    %279 = vmatprep.subr.mxu0 0.0
    %280 = vmatpush1.msra.mxu0 0.0
    %281 = vmatprep.subr.mxu0 0.0
    %282 = vmatpush1.msra.mxu0 0.0
    %283 = vmatprep.subr.mxu0 0.0
    %284 = vmatpush1.msra.mxu0 0.0
    %285 = vmatprep.subr.mxu0 0.0
    %286 = vmatpush1.msra.mxu0 0.0
    %287 = vmatprep.subr.mxu0 0.0
    %288 = vmatpush1.msra.mxu0 0.0
    %289 = vmatprep.subr.mxu0 0.0
    %290 = vmatpush1.msra.mxu0 0.0
    %291 = vmatprep.subr.mxu0 0.0
    %292 = vmatpush1.msra.mxu0 0.0
    %293 = vmatprep.subr.mxu0 0.0
    %294 = vmatpush1.msra.mxu0 0.0
    %295 = vmatprep.subr.mxu0 0.0
    %296 = vmatpush1.msra.mxu0 0.0
    %297 = vmatprep.subr.mxu0 0.0
    %298 = vmatpush1.msra.mxu0 0.0
    %299 = vmatprep.subr.mxu0 0.0
    %300 = vmatpush1.msra.mxu0 0.0
    %301 = vmatprep.subr.mxu0 0.0
    %302 = vmatpush1.msra.mxu0 0.0
    %303 = vmatprep.subr.mxu0 0.0
    %304 = vmatpush1.msra.mxu0 0.0
    %305 = vmatprep.subr.mxu0 0.0
    %306 = vmatpush1.msra.mxu0 0.0
    %307 = vmatprep.subr.mxu0 0.0
    %308 = vmatpush1.msra.mxu0 0.0
    %309 = vmatprep.subr.mxu0 0.0
    %310 = vmatpush1.msra.mxu0 0.0
    %311 = vmatprep.subr.mxu0 0.0
    %312 = vmatpush1.msra.mxu0 0.0
    %313 = vmatprep.subr.mxu0 0.0
    %314 = vmatpush1.msra.mxu0 0.0
    %315 = vmatprep.subr.mxu0 0.0
    %316 = vmatpush1.msra.mxu0 0.0
    %317 = vmatprep.subr.mxu0 0.0
    %318 = vmatpush1.msra.mxu0 0.0
    %319 = vmatprep.subr.mxu0 0.0
    %320 = vmatpush1.msra.mxu0 0.0
    %321 = vmatprep.subr.mxu0 0.0
    %322 = vmatpush1.msra.mxu0 0.0
    %323 = vmatprep.subr.mxu0 0.0
    %324 = vmatpush1.msra.mxu0 0.0
    %325 = vmatprep.subr.mxu0 0.0
    %326 = vmatpush1.msra.mxu0 0.0
    %327 = vmatprep.subr.mxu0 0.0
    %328 = vmatpush1.msra.mxu0 0.0
    %329 = vmatprep.subr.mxu0 0.0
    %330 = vmatpush1.msra.mxu0 0.0
    %331 = vmatprep.subr.mxu0 0.0
    %332 = vmatpush1.msra.mxu0 0.0
    %333 = vmatprep.mubr.f32.mxu0 0.0
    %334 = vmatmul.mubr.f32.gmra.mrb[0].mxu0 %v258
    %v335 = vpop.f32.mrb[0].mxu0
    %v336 = vadd.f32 %v240, %v335
    %v337 = vpop.f32.mrb[0].mxu0
    %338 = vmatprep.mubr.f32.mxu0 0.0
    %339 = vmatmul.mubr.f32.gmra.mrb[0].mxu0 %v261
    %v340 = vpop.f32.mrb[0].mxu0
    %v341 = vadd.f32 %v245, %v340
    %v342 = vpop.f32.mrb[0].mxu0
    %343 = vmatprep.mubr.f32.mxu0 0.0
    %344 = vmatmul.mubr.f32.gmra.mrb[0].mxu0 %v264
    %v345 = vpop.f32.mrb[0].mxu0
    %v346 = vadd.f32 %v250, %v345
    %v347 = vpop.f32.mrb[0].mxu0
    %348 = vmatprep.mubr.f32.mxu0 0.0
    %349 = vmatmul.mubr.f32.gmra.mrb[0].mxu0 %v267
    %v350 = vpop.f32.mrb[0].mxu0
    %v351 = vadd.f32 %v255, %v350
    %v352 = vpop.f32.mrb[0].mxu0
    %353 = vdwg.mxu0
    %v354 = vmax.f32 %v336, 0.0
    %v355 = vmax.f32 %v341, 0.0
    %v356 = vmax.f32 %v346, 0.0
    %v357 = vmax.f32 %v351, 0.0
    %v358 = vld [vmem:[%s5] sm:$0xff]
    %v359 = vld [vmem:[%s5 + $0x8] sm:$0xff]
    %v360 = vld [vmem:[%s5 + $0x10] sm:$0xff]
    %v361 = vld [vmem:[%s5 + $0x18] sm:$0xff]
    %v362 = vld [vmem:[%s6] sm:$0xff]
    %v363 = vld [vmem:[%s6 + $0x8] sm:$0xff]
    %v364 = vld [vmem:[%s6 + $0x10] sm:$0xff]
    %v365 = vld [vmem:[%s6 + $0x18] sm:$0xff]
    %367 = vset.pattern.permute.xlu0 0
    %368 = vperm.xlu0 %367, %v362
    %v369 = vpop.permute.xlu0 %368
    %372 = vset.pattern.permute.xlu0 0
    %373 = vperm.xlu0 %372, %v363
    %v374 = vpop.permute.xlu0 %373
    %377 = vset.pattern.permute.xlu0 0
    %378 = vperm.xlu0 %377, %v364
    %v379 = vpop.permute.xlu0 %378
    %382 = vset.pattern.permute.xlu0 0
    %383 = vperm.xlu0 %382, %v365
    %v384 = vpop.permute.xlu0 %383
    %v387 = vsel %vm79, %v358, 0
    %v390 = vsel %vm79, %v359, 0
    %v393 = vsel %vm79, %v360, 0
    %v396 = vsel %vm79, %v361, 0
    %398 = vmatprep.subr.mxu0 0.0
    %399 = vmatpush1.msra.mxu0 %v354
    %400 = vmatprep.subr.mxu0 0.0
    %401 = vmatpush1.msra.mxu0 %v355
    %402 = vmatprep.subr.mxu0 0.0
    %403 = vmatpush1.msra.mxu0 %v356
    %404 = vmatprep.subr.mxu0 0.0
    %405 = vmatpush1.msra.mxu0 %v357
    %406 = vmatprep.subr.mxu0 0.0
    %407 = vmatpush1.msra.mxu0 0.0
    %408 = vmatprep.subr.mxu0 0.0
    %409 = vmatpush1.msra.mxu0 0.0
    %410 = vmatprep.subr.mxu0 0.0
    %411 = vmatpush1.msra.mxu0 0.0
    %412 = vmatprep.subr.mxu0 0.0
    %413 = vmatpush1.msra.mxu0 0.0
    %414 = vmatprep.subr.mxu0 0.0
    %415 = vmatpush1.msra.mxu0 0.0
    %416 = vmatprep.subr.mxu0 0.0
    %417 = vmatpush1.msra.mxu0 0.0
    %418 = vmatprep.subr.mxu0 0.0
    %419 = vmatpush1.msra.mxu0 0.0
    %420 = vmatprep.subr.mxu0 0.0
    %421 = vmatpush1.msra.mxu0 0.0
    %422 = vmatprep.subr.mxu0 0.0
    %423 = vmatpush1.msra.mxu0 0.0
    %424 = vmatprep.subr.mxu0 0.0
    %425 = vmatpush1.msra.mxu0 0.0
    %426 = vmatprep.subr.mxu0 0.0
    %427 = vmatpush1.msra.mxu0 0.0
    %428 = vmatprep.subr.mxu0 0.0
    %429 = vmatpush1.msra.mxu0 0.0
    %430 = vmatprep.subr.mxu0 0.0
    %431 = vmatpush1.msra.mxu0 0.0
    %432 = vmatprep.subr.mxu0 0.0
    %433 = vmatpush1.msra.mxu0 0.0
    %434 = vmatprep.subr.mxu0 0.0
    %435 = vmatpush1.msra.mxu0 0.0
    %436 = vmatprep.subr.mxu0 0.0
    %437 = vmatpush1.msra.mxu0 0.0
    %438 = vmatprep.subr.mxu0 0.0
    %439 = vmatpush1.msra.mxu0 0.0
    %440 = vmatprep.subr.mxu0 0.0
    %441 = vmatpush1.msra.mxu0 0.0
    %442 = vmatprep.subr.mxu0 0.0
    %443 = vmatpush1.msra.mxu0 0.0
    %444 = vmatprep.subr.mxu0 0.0
    %445 = vmatpush1.msra.mxu0 0.0
    %446 = vmatprep.subr.mxu0 0.0
    %447 = vmatpush1.msra.mxu0 0.0
    %448 = vmatprep.subr.mxu0 0.0
    %449 = vmatpush1.msra.mxu0 0.0
    %450 = vmatprep.subr.mxu0 0.0
    %451 = vmatpush1.msra.mxu0 0.0
    %452 = vmatprep.subr.mxu0 0.0
    %453 = vmatpush1.msra.mxu0 0.0
    %454 = vmatprep.subr.mxu0 0.0
    %455 = vmatpush1.msra.mxu0 0.0
    %456 = vmatprep.subr.mxu0 0.0
    %457 = vmatpush1.msra.mxu0 0.0
    %458 = vmatprep.subr.mxu0 0.0
    %459 = vmatpush1.msra.mxu0 0.0
    %460 = vmatprep.subr.mxu0 0.0
    %461 = vmatpush1.msra.mxu0 0.0
    %462 = vmatprep.mubr.f32.mxu0 0.0
    %463 = vmatmul.mubr.f32.gmra.mrb[0].mxu0 %v387
    %v464 = vpop.f32.mrb[0].mxu0
    %v465 = vadd.f32 %v369, %v464
    %v466 = vpop.f32.mrb[0].mxu0
    %467 = vmatprep.mubr.f32.mxu0 0.0
    %468 = vmatmul.mubr.f32.gmra.mrb[0].mxu0 %v390
    %v469 = vpop.f32.mrb[0].mxu0
    %v470 = vadd.f32 %v374, %v469
    %v471 = vpop.f32.mrb[0].mxu0
    %472 = vmatprep.mubr.f32.mxu0 0.0
    %473 = vmatmul.mubr.f32.gmra.mrb[0].mxu0 %v393
    %v474 = vpop.f32.mrb[0].mxu0
    %v475 = vadd.f32 %v379, %v474
    %v476 = vpop.f32.mrb[0].mxu0
    %477 = vmatprep.mubr.f32.mxu0 0.0
    %478 = vmatmul.mubr.f32.gmra.mrb[0].mxu0 %v396
    %v479 = vpop.f32.mrb[0].mxu0
    %v480 = vadd.f32 %v384, %v479
    %v481 = vpop.f32.mrb[0].mxu0
    %482 = vdwg.mxu0
    %v483 = vmax.f32 %v465, 0.0
    %v484 = vmax.f32 %v470, 0.0
    %v485 = vmax.f32 %v475, 0.0
    %v486 = vmax.f32 %v480, 0.0
    %v487 = vld [vmem:[%s7] sm:$0x1]
    %v488 = vld [vmem:[#allocation2] sm:$0x1]
    %490 = vset.pattern.permute.xlu0 0
    %491 = vperm.xlu0 %490, %v488
    %v492 = vpop.permute.xlu0 %491
    %v494 = vlaneseq
    %v495 = vshrl.u32 %v494, 7
    %v496 = vsub.s32 0, %v495
    %v497 = vrot.slane %v492, %v496
    %v499 = vsel %vm79, %v487, 0
    %501 = vmatprep.subr.mxu0 0.0
    %502 = vmatpush1.msra.mxu0 %v483
    %503 = vmatprep.subr.mxu0 0.0
    %504 = vmatpush1.msra.mxu0 %v484
    %505 = vmatprep.subr.mxu0 0.0
    %506 = vmatpush1.msra.mxu0 %v485
    %507 = vmatprep.subr.mxu0 0.0
    %508 = vmatpush1.msra.mxu0 %v486
    %509 = vmatprep.subr.mxu0 0.0
    %510 = vmatpush1.msra.mxu0 0.0
    %511 = vmatprep.subr.mxu0 0.0
    %512 = vmatpush1.msra.mxu0 0.0
    %513 = vmatprep.subr.mxu0 0.0
    %514 = vmatpush1.msra.mxu0 0.0
    %515 = vmatprep.subr.mxu0 0.0
    %516 = vmatpush1.msra.mxu0 0.0
    %517 = vmatprep.subr.mxu0 0.0
    %518 = vmatpush1.msra.mxu0 0.0
    %519 = vmatprep.subr.mxu0 0.0
    %520 = vmatpush1.msra.mxu0 0.0
    %521 = vmatprep.subr.mxu0 0.0
    %522 = vmatpush1.msra.mxu0 0.0
    %523 = vmatprep.subr.mxu0 0.0
    %524 = vmatpush1.msra.mxu0 0.0
    %525 = vmatprep.subr.mxu0 0.0
    %526 = vmatpush1.msra.mxu0 0.0
    %527 = vmatprep.subr.mxu0 0.0
    %528 = vmatpush1.msra.mxu0 0.0
    %529 = vmatprep.subr.mxu0 0.0
    %530 = vmatpush1.msra.mxu0 0.0
    %531 = vmatprep.subr.mxu0 0.0
    %532 = vmatpush1.msra.mxu0 0.0
    %533 = vmatprep.subr.mxu0 0.0
    %534 = vmatpush1.msra.mxu0 0.0
    %535 = vmatprep.subr.mxu0 0.0
    %536 = vmatpush1.msra.mxu0 0.0
    %537 = vmatprep.subr.mxu0 0.0
    %538 = vmatpush1.msra.mxu0 0.0
    %539 = vmatprep.subr.mxu0 0.0
    %540 = vmatpush1.msra.mxu0 0.0
    %541 = vmatprep.subr.mxu0 0.0
    %542 = vmatpush1.msra.mxu0 0.0
    %543 = vmatprep.subr.mxu0 0.0
    %544 = vmatpush1.msra.mxu0 0.0
    %545 = vmatprep.subr.mxu0 0.0
    %546 = vmatpush1.msra.mxu0 0.0
    %547 = vmatprep.subr.mxu0 0.0
    %548 = vmatpush1.msra.mxu0 0.0
    %549 = vmatprep.subr.mxu0 0.0
    %550 = vmatpush1.msra.mxu0 0.0
    %551 = vmatprep.subr.mxu0 0.0
    %552 = vmatpush1.msra.mxu0 0.0
    %553 = vmatprep.subr.mxu0 0.0
    %554 = vmatpush1.msra.mxu0 0.0
    %555 = vmatprep.subr.mxu0 0.0
    %556 = vmatpush1.msra.mxu0 0.0
    %557 = vmatprep.subr.mxu0 0.0
    %558 = vmatpush1.msra.mxu0 0.0
    %559 = vmatprep.subr.mxu0 0.0
    %560 = vmatpush1.msra.mxu0 0.0
    %561 = vmatprep.subr.mxu0 0.0
    %562 = vmatpush1.msra.mxu0 0.0
    %563 = vmatprep.subr.mxu0 0.0
    %564 = vmatpush1.msra.mxu0 0.0
    %565 = vmatprep.mubr.f32.mxu0 0.0
    %566 = vmatmul.mubr.f32.gmra.mrb[0].mxu0 %v499
    %v567 = vpop.f32.mrb[0].mxu0
    %v568 = vadd.f32 %v497, %v567
    %v569 = vpop.f32.mrb[0].mxu0
    %570 = vdwg.mxu0
    %v571 = vxor.u32 %v568, 2147483648
    %v572 = vmul.f32 %v571, 1.442695
    %v573 = vpow.pop %v572
    %v574 = vadd.f32 %v573, 1.0
    %v575 = vrcp.pop %v574
    %v576 = vmul.f32 1.0, %v575
    %577 = vst [vmem:[#allocation3] sm:$0x1] %v576
    // Predicated region
    $region38: #{tpu_custom_call.1} parent=1 // pred_check
      _
    $region39: #{tpu_custom_call.1} parent=1 // pred_check_branch
      %579 = sbr.rel (0) target = $region41
    $region40: #{tpu_custom_call.1} parent=1 // pred_region
      %s581 = ssub.s32 16, 16
      %582 = vsyncadd [#allocation4], %s581
      %s584 = sshll.u32 [#allocation3], 4
      %s585 = int_to_ptr.vmem [resolvable:$true] %s584
      %587 = dma.vmem_to_hbm [thread:$0]  %s585, 16, %s9, [#allocation4]
    $region41: #{tpu_custom_call.1} parent=1 // pred_fallthru
      _
    // Predicated region
    $region42: #{tpu_custom_call.1} parent=1 // pred_check
      _
    $region43: #{tpu_custom_call.1} parent=1 // pred_check_branch
      %589 = sbr.rel (0) target = $region45
    $region44: #{tpu_custom_call.1} parent=1 // pred_region
      %590 = dma.done [#allocation4], 16
    $region45: #{tpu_custom_call.1} parent=1 // pred_fallthru
      _
    %591 = vsyncpa [#allocation4], 1

</llo_original>
